<compile_context>
chip_gen: v6e
topology: v6e:2x2x1
jax: 0.10.0
libtpu: 0.0.40
codegen_flags: <defaults>
</compile_context>

<pallas_src>
import jax
import jax.numpy as jnp
from jax.experimental import pallas as pl
from jax.experimental.pallas import tpu as pltpu

trainBurnIn = 10
burnIn = 0 + trainBurnIn
chunkLength = 365 + burnIn  # = 375

_LANES = 512           # lane width per tile (multiple of 128)
_MAX_TILE_ROWS = 1024  # rows per tile -> 2 MiB f32 per input tile
                       # (2 inputs x 2 pipeline buffers ~= 8 MiB VMEM)


def _cdiv(a: int, b: int) -> int:
    return -(-a // b)


def _round_up(x: int, m: int) -> int:
    return _cdiv(x, m) * m


def _make_kernel(tile_rows: int, lanes: int):
    groups = tile_rows // 8

    def kernel(yhat_ref, y_ref, out_ref):
        k = pl.program_id(1)

        @pl.when(k == 0)
        def _init():
            out_ref[...] = jnp.zeros_like(out_ref)

        y = y_ref[...].astype(jnp.float32)
        yhat = yhat_ref[...].astype(jnp.float32)
        pct = jnp.abs(yhat - y) / y
        # Partial-reduce (tile_rows, lanes) -> (8, lanes): sum over sublane
        # groups only.  This is plain vreg adds (VALU) that co-issue with the
        # vector loads; no cross-lane (XLU) reduce in the hot loop.
        out_ref[...] += pct.reshape(groups, 8, lanes).sum(axis=0)

    return kernel


def percentage_loss(yhat: jax.Array, y: jax.Array) -> jax.Array:
    """Pallas implementation of PercentageLoss.forward."""
    assert yhat.shape == y.shape
    batch = y.shape[0]
    n = int(y.size)

    lanes = _LANES
    rows = _cdiv(n, lanes)
    tile_rows = min(_MAX_TILE_ROWS, _round_up(rows, 8))
    row_tiles = _cdiv(rows, tile_rows)
    n_parallel = 2 if row_tiles >= 2 else 1   # per-core partials (megacore / v7x)
    k_steps = _cdiv(row_tiles, n_parallel)
    rows_padded = n_parallel * k_steps * tile_rows
    n_padded = rows_padded * lanes

    yf = yhat.reshape(-1)
    yr = y.reshape(-1)
    pad = n_padded - n
    if pad:
        # Pad with (yhat=1, y=1) so padded elements contribute exactly 0.
        yf = jnp.concatenate([yf, jnp.ones((pad,), yf.dtype)])
        yr = jnp.concatenate([yr, jnp.ones((pad,), yr.dtype)])
    yf = yf.reshape(rows_padded, lanes)
    yr = yr.reshape(rows_padded, lanes)

    kernel = _make_kernel(tile_rows, lanes)

    def in_map(p, k):
        return (p * k_steps + k, 0)

    partials = pl.pallas_call(
        kernel,
        out_shape=jax.ShapeDtypeStruct((n_parallel * 8, lanes), jnp.float32),
        grid_spec=pltpu.PrefetchScalarGridSpec(
            num_scalar_prefetch=0,
            grid=(n_parallel, k_steps),
            in_specs=[
                pl.BlockSpec((tile_rows, lanes), in_map),
                pl.BlockSpec((tile_rows, lanes), in_map),
            ],
            # Each parallel program owns its own (8, lanes) accumulator block;
            # it stays resident across the "arbitrary" k axis.
            out_specs=pl.BlockSpec((8, lanes), lambda p, k: (p, 0)),
        ),
        compiler_params=pltpu.CompilerParams(
            dimension_semantics=("parallel", "arbitrary"),
            vmem_limit_bytes=32 * 1024 * 1024,
        ),
    )(yf, yr)

    # Tiny final reduction + normalization in JAX.  Denominator uses the
    # ORIGINAL batch size and the fixed chunkLength constant (matches the
    # PyTorch reference), never the padded/reshaped extents.
    total = jnp.sum(partials, dtype=jnp.float32)
    return total / (jnp.float32(batch) * jnp.float32(chunkLength))


def _reference(yhat, y):
    return jnp.sum(jnp.abs(yhat - y) / y) / y.shape[0] / chunkLength


if __name__ == "__main__":
    key = jax.random.PRNGKey(0)
    k1, k2 = jax.random.split(key)

    # Small shapes consistent with the loss (it works on any matching shapes):
    B, T, D = 2, 8, 32
    # NOTE: y must be nonzero (the reference divides by y); data guarantees y > 0.
    y = jax.random.uniform(k1, (B, T, D), jnp.float32, minval=0.5, maxval=2.0)
    yhat = y + 0.1 * jax.random.normal(k2, (B, T, D), jnp.float32)

    loss = percentage_loss(yhat, y)
    jax.block_until_ready(loss)

    ref = _reference(yhat, y)
    assert jnp.allclose(loss, ref, rtol=1e-5, atol=1e-6), (loss, ref)

    print("KERNEL_OK")
</pallas_src>

<mosaic_0001>
module attributes {stable_mosaic.version = 11 : i64} {
  func.func @kernel(%arg0: i32, %arg1: i32, %arg2: memref<8x512xf32, #tpu.memory_space<vmem>>, %arg3: memref<8x512xf32, #tpu.memory_space<vmem>>, %arg4: memref<8x512xf32, #tpu.memory_space<vmem>>) attributes {dimension_semantics = [#tpu.dimension_semantics<parallel>, #tpu.dimension_semantics<arbitrary>], iteration_bounds = array<i64: 1, 1>, scalar_prefetch = 0 : i64, scratch_operands = 0 : i64, tpu.core_type = #tpu.core_type<tc>, window_params = [{transform_indices = @transform_0, window_bounds = array<i64: 8, 512>}, {transform_indices = @transform_1, window_bounds = array<i64: 8, 512>}, {transform_indices = @transform_2, window_bounds = array<i64: 8, 512>}]} {
    %c0_i32 = arith.constant 0 : i32
    %0 = arith.cmpi eq, %arg1, %c0_i32 : i32
    %1 = arith.extui %0 : i1 to i32
    %c0_i32_0 = arith.constant 0 : i32
    %2 = arith.cmpi ne, %1, %c0_i32_0 : i32
    scf.if %2 {
      %cst_8 = arith.constant 0.000000e+00 : f32
      %13 = vector.broadcast %cst_8 : f32 to vector<8x512xf32>
      %c0_9 = arith.constant 0 : index
      %c0_10 = arith.constant 0 : index
      %14 = vector.load %arg4[%c0_9, %c0_10] : memref<8x512xf32, #tpu.memory_space<vmem>>, vector<8x512xf32>
      tpu.vector_store %arg4[%c0_9, %c0_10], %13 {strides = array<i32>} : memref<8x512xf32, #tpu.memory_space<vmem>>, vector<8x512xf32>,
    } else {
    }
    %c0 = arith.constant 0 : index
    %c0_1 = arith.constant 0 : index
    %3 = vector.load %arg3[%c0, %c0_1] : memref<8x512xf32, #tpu.memory_space<vmem>>, vector<8x512xf32>
    %c0_2 = arith.constant 0 : index
    %c0_3 = arith.constant 0 : index
    %4 = vector.load %arg2[%c0_2, %c0_3] : memref<8x512xf32, #tpu.memory_space<vmem>>, vector<8x512xf32>
    %5 = arith.subf %4, %3 : vector<8x512xf32>
    %6 = math.absf %5 : vector<8x512xf32>
    %7 = arith.divf %6, %3 : vector<8x512xf32>
    %c0_4 = arith.constant 0 : index
    %c0_5 = arith.constant 0 : index
    %8 = vector.load %arg4[%c0_4, %c0_5] : memref<8x512xf32, #tpu.memory_space<vmem>>, vector<8x512xf32>
    %9 = vector.shape_cast %7 : vector<8x512xf32> to vector<1x8x512xf32>
    %cst = arith.constant dense<0.000000e+00> : vector<8x512xf32>
    %10 = vector.multi_reduction <add>, %9, %cst [0] : vector<1x8x512xf32> to vector<8x512xf32>
    %11 = arith.addf %8, %10 : vector<8x512xf32>
    %c0_6 = arith.constant 0 : index
    %c0_7 = arith.constant 0 : index
    %12 = vector.load %arg4[%c0_6, %c0_7] : memref<8x512xf32, #tpu.memory_space<vmem>>, vector<8x512xf32>
    tpu.vector_store %arg4[%c0_6, %c0_7], %11 {strides = array<i32>} : memref<8x512xf32, #tpu.memory_space<vmem>>, vector<8x512xf32>,
    return
  }
  func.func @transform_0(%arg0: i32, %arg1: i32) -> (i32, i32) {
    %c1_i32 = arith.constant 1 : i32
    %0 = arith.muli %arg0, %c1_i32 : i32
    %1 = arith.addi %0, %arg1 : i32
    %c0_i32 = arith.constant 0 : i32
    %c0_i32_0 = arith.constant 0 : i32
    return %1, %c0_i32 : i32, i32
  }
  func.func @transform_1(%arg0: i32, %arg1: i32) -> (i32, i32) {
    %c1_i32 = arith.constant 1 : i32
    %0 = arith.muli %arg0, %c1_i32 : i32
    %1 = arith.addi %0, %arg1 : i32
    %c0_i32 = arith.constant 0 : i32
    %c0_i32_0 = arith.constant 0 : i32
    return %1, %c0_i32 : i32, i32
  }
  func.func @transform_2(%arg0: i32, %arg1: i32) -> (i32, i32) {
    %c0_i32 = arith.constant 0 : i32
    %c0_i32_0 = arith.constant 0 : i32
    return %arg0, %c0_i32 : i32, i32
  }
}

</mosaic_0001>

<llo_original>
// kernel: tpu_custom_call.1
$region0: #{tpu_custom_call.1}
  #allocation0 [shape = 'u32[]', space=smem, size = 0x4, offset = 0x4, fixed_abs, tag = 'smem constant byte address 0x4 - core index']
  #allocation1 [shape = 'u32[144,128]{1,0:T(1,128)}', space=vmem, size = 0x12000, scoped, tag = 'internal scratch']
  %s0 = inlined_call_operand.hbm [shape: f32[8,512], index: 0, kind: input, shape index: {}]
  %s1 = inlined_call_operand.hbm [shape: f32[8,512], index: 1, kind: input, shape index: {}]
  %s2 = inlined_call_operand.hbm [shape: f32[8,512], index: 2, kind: output, shape index: {}]
  %s3 = sld [smem:[#allocation0]]
  $region30: #{tpu_custom_call.1} parent=0
    _
  %s5 = ssub.s32 1, %s3
  %s6 = scalar_select 0, %s5, %s3
  $region1: #{tpu_custom_call.1} parent=0
    #allocation2 [shape = 'u8[16384]{0}', space=vmem, size = 0x4000, scoped, tag = 'input window, operand 0, single buffered']
    #allocation3 [shape = 's32[1]{0}', space=sflag, size = 0x4, scoped, tag = 'scoped memory for tpu_custom_call.1']
    #allocation4 [shape = 's32[1]{0}', space=sflag, size = 0x4, scoped, tag = 'scoped memory for tpu_custom_call.1']
    #allocation5 [shape = 'u8[16384]{0}', space=vmem, size = 0x4000, scoped, tag = 'input window, operand 1, single buffered']
    #allocation6 [shape = 's32[1]{0}', space=sflag, size = 0x4, scoped, tag = 'scoped memory for tpu_custom_call.1']
    #allocation7 [shape = 'u8[16384]{0}', space=vmem, size = 0x4000, scoped, tag = 'output window, operand 0, single buffered']
    %7 = vsyncpa [#allocation3], 0
    %8 = vsyncpa [#allocation6], 0
    %9 = vsyncpa [#allocation4], 0
    // Predicated region
    $region2: #{tpu_custom_call.1} parent=1 // pred_check
      _
    $region3: #{tpu_custom_call.1} parent=1 // pred_check_branch
      %11 = sbr.rel (0) target = $region5
    $region4: #{tpu_custom_call.1} parent=1 // pred_region
      %s12 = sadd.s32 0, 0
      %s14 = ssub.s32 512, 512
      %15 = vsyncadd [#allocation3], %s14
      %s16 = smul.addr %s12, 4
      %s17 = smul.addr %s16, 128
      %s18 = scalar_lea.hbm %s0, %s17
      %s20 = sshll.u32 [#allocation2], 4
      %s21 = int_to_ptr.vmem [resolvable:$true] %s20
      %23 = dma.hbm_to_vmem [thread:$0]  %s18, 512, %s21, [#allocation3]
    $region5: #{tpu_custom_call.1} parent=1 // pred_fallthru
      _
    // Predicated region
    $region6: #{tpu_custom_call.1} parent=1 // pred_check
      _
    $region7: #{tpu_custom_call.1} parent=1 // pred_check_branch
      %25 = sbr.rel (0) target = $region9
    $region8: #{tpu_custom_call.1} parent=1 // pred_region
      %s26 = sadd.s32 0, 0
      %s28 = ssub.s32 512, 512
      %29 = vsyncadd [#allocation6], %s28
      %s30 = smul.addr %s26, 4
      %s31 = smul.addr %s30, 128
      %s32 = scalar_lea.hbm %s1, %s31
      %s34 = sshll.u32 [#allocation5], 4
      %s35 = int_to_ptr.vmem [resolvable:$true] %s34
      %37 = dma.hbm_to_vmem [thread:$0]  %s32, 512, %s35, [#allocation6]
    $region9: #{tpu_custom_call.1} parent=1 // pred_fallthru
      _
    // Predicated region
    $region10: #{tpu_custom_call.1} parent=1 // pred_check
      _
    $region11: #{tpu_custom_call.1} parent=1 // pred_check_branch
      %39 = sbr.rel (0) target = $region13
    $region12: #{tpu_custom_call.1} parent=1 // pred_region
      %40 = dma.done [#allocation3], 512
    $region13: #{tpu_custom_call.1} parent=1 // pred_fallthru
      _
    // Predicated region
    $region14: #{tpu_custom_call.1} parent=1 // pred_check
      _
    $region15: #{tpu_custom_call.1} parent=1 // pred_check_branch
      %42 = sbr.rel (0) target = $region17
    $region16: #{tpu_custom_call.1} parent=1 // pred_region
      %43 = dma.done [#allocation6], 512
    $region17: #{tpu_custom_call.1} parent=1 // pred_fallthru
      _
    %s44 = sadd.s32 0, 0
    %s45 = sadd.s32 0, 0
    %p46 = scmp.eq.s32.totalorder 0, 0
    // Predicated region
    $region18: #{tpu_custom_call.1} parent=1 // pred_check
      %p47 = pneg %p46
    $region19: #{tpu_custom_call.1} parent=1 // pred_check_branch
      %49 = sbr.rel (%p47) target = $region21
    $region20: #{tpu_custom_call.1} parent=1 // pred_region
      %50 = vst [vmem:[#allocation7] sm:$0xff] 0.0
      %51 = vst [vmem:[#allocation7 + $0x8] sm:$0xff] 0.0
      %52 = vst [vmem:[#allocation7 + $0x10] sm:$0xff] 0.0
      %53 = vst [vmem:[#allocation7 + $0x18] sm:$0xff] 0.0
    $region21: #{tpu_custom_call.1} parent=1 // pred_fallthru
      _
    %v54 = vld [vmem:[#allocation5] sm:$0xff]
    %v55 = vld [vmem:[#allocation5 + $0x8] sm:$0xff]
    %v56 = vld [vmem:[#allocation5 + $0x10] sm:$0xff]
    %v57 = vld [vmem:[#allocation5 + $0x18] sm:$0xff]
    %v58 = vld [vmem:[#allocation2] sm:$0xff]
    %v59 = vld [vmem:[#allocation2 + $0x8] sm:$0xff]
    %v60 = vld [vmem:[#allocation2 + $0x10] sm:$0xff]
    %v61 = vld [vmem:[#allocation2 + $0x18] sm:$0xff]
    %v62 = vsub.f32 %v58, %v54
    %v63 = vsub.f32 %v59, %v55
    %v64 = vsub.f32 %v60, %v56
    %v65 = vsub.f32 %v61, %v57
    %v66 = vand.u32 2147483647, %v62
    %v67 = vand.u32 2147483647, %v63
    %v68 = vand.u32 2147483647, %v64
    %v69 = vand.u32 2147483647, %v65
    %v70 = vrcp.pop %v54
    %v71 = vmul.f32 %v66, %v70
    %v72 = vrcp.pop %v55
    %v73 = vmul.f32 %v67, %v72
    %v74 = vrcp.pop %v56
    %v75 = vmul.f32 %v68, %v74
    %v76 = vrcp.pop %v57
    %v77 = vmul.f32 %v69, %v76
    %v78 = vld [vmem:[#allocation7] sm:$0xff]
    %v79 = vld [vmem:[#allocation7 + $0x8] sm:$0xff]
    %v80 = vld [vmem:[#allocation7 + $0x10] sm:$0xff]
    %v81 = vld [vmem:[#allocation7 + $0x18] sm:$0xff]
    %v82 = vadd.f32 %v71, 0.0
    %v83 = vadd.f32 %v73, 0.0
    %v84 = vadd.f32 %v75, 0.0
    %v85 = vadd.f32 %v77, 0.0
    %v86 = vadd.f32 %v78, %v82
    %v87 = vadd.f32 %v79, %v83
    %v88 = vadd.f32 %v80, %v84
    %v89 = vadd.f32 %v81, %v85
    %90 = vst [vmem:[#allocation7] sm:$0xff] %v86
    %91 = vst [vmem:[#allocation7 + $0x8] sm:$0xff] %v87
    %92 = vst [vmem:[#allocation7 + $0x10] sm:$0xff] %v88
    %93 = vst [vmem:[#allocation7 + $0x18] sm:$0xff] %v89
    // Predicated region
    $region22: #{tpu_custom_call.1} parent=1 // pred_check
      _
    $region23: #{tpu_custom_call.1} parent=1 // pred_check_branch
      %95 = sbr.rel (0) target = $region25
    $region24: #{tpu_custom_call.1} parent=1 // pred_region
      %s97 = ssub.s32 512, 512
      %98 = vsyncadd [#allocation4], %s97
      %s100 = sshll.u32 [#allocation7], 4
      %s101 = int_to_ptr.vmem [resolvable:$true] %s100
      %103 = dma.vmem_to_hbm [thread:$0]  %s101, 512, %s2, [#allocation4]
    $region25: #{tpu_custom_call.1} parent=1 // pred_fallthru
      _
    // Predicated region
    $region26: #{tpu_custom_call.1} parent=1 // pred_check
      _
    $region27: #{tpu_custom_call.1} parent=1 // pred_check_branch
      %105 = sbr.rel (0) target = $region29
    $region28: #{tpu_custom_call.1} parent=1 // pred_region
      %106 = dma.done [#allocation4], 512
    $region29: #{tpu_custom_call.1} parent=1 // pred_fallthru
      _
    %107 = vsyncpa [#allocation3], 1
    %108 = vsyncpa [#allocation6], 1
    %109 = vsyncpa [#allocation4], 1

</llo_original>
